<compile_context>
chip_gen: v7x
topology: tpu7x:2x2x1
jax: 0.10.0
libtpu: 0.0.40
codegen_flags: <defaults>
</compile_context>

<pallas_src>
import jax
import jax.numpy as jnp
from jax.experimental import pallas as pl
from jax.experimental.pallas import tpu as pltpu

BATCH_TILE = 8        # sublane-aligned per-grid-step batch block
LANE = 128            # lane width; action axis padded to a multiple of this
NEG_INF = -1e30       # bias for padded action columns (exp underflows to 0)


def policy_kernel(x_ref, w1p_ref, w2p_ref, out_ref):
    # x_ref:   (BATCH_TILE, F)
    # w1p_ref: (F + 1, H)      rows [0:F] = w1, row F = b1
    # w2p_ref: (H + 1, A_pad)  rows [0:H] = w2 (zero-padded cols), row H = b2
    #                          (padded cols of the bias row are NEG_INF)
    # out_ref: (BATCH_TILE, A_pad)
    F_ = x_ref.shape[1]
    H = w1p_ref.shape[1]

    x = x_ref[...]
    w1 = w1p_ref[:F_, :]
    b1 = w1p_ref[F_:F_ + 1, :]
    h = jnp.dot(x, w1, preferred_element_type=jnp.float32) + b1
    h = jnp.maximum(h, 0.0)                                   # ReLU

    w2 = w2p_ref[:H, :]
    b2 = w2p_ref[H:H + 1, :]
    logits = jnp.dot(h, w2, preferred_element_type=jnp.float32) + b2

    # Numerically stable log-softmax over the (padded) action axis.  Padded
    # columns carry a -1e30 bias: exp(-1e30 - m) underflows to exactly 0, so
    # they do not perturb the result for the real action columns.
    m = jnp.max(logits, axis=-1, keepdims=True)
    lse = m + jnp.log(jnp.sum(jnp.exp(logits - m), axis=-1, keepdims=True))
    out_ref[...] = (logits - lse).astype(out_ref.dtype)


def policy_forward_batched(states, w1, b1, w2, b2):
    """states: (B, *state_shape). Returns (B, num_actions) log-probabilities."""
    B = states.shape[0]
    x = states.reshape(B, -1).astype(jnp.float32)             # (B, F)
    F_ = x.shape[1]
    H = w1.shape[1]
    A = w2.shape[1]
    A_pad = ((A + LANE - 1) // LANE) * LANE                   # lane-dense output

    # Pad batch to a multiple of BATCH_TILE (zero rows; sliced off at the end).
    B_pad = ((B + BATCH_TILE - 1) // BATCH_TILE) * BATCH_TILE
    if B_pad != B:
        x = jnp.pad(x, ((0, B_pad - B), (0, 0)))

    # Pack bias into the weight buffers (3 DMA descriptors instead of 6).
    w1p = jnp.concatenate([w1.astype(jnp.float32),
                           b1.reshape(1, H).astype(jnp.float32)], axis=0)   # (F+1, H)
    w2p = jnp.concatenate([w2.astype(jnp.float32),
                           b2.reshape(1, A).astype(jnp.float32)], axis=0)   # (H+1, A)
    w2p = jnp.pad(w2p, ((0, 0), (0, A_pad - A)))                            # (H+1, A_pad)
    if A_pad > A:
        w2p = w2p.at[H, A:].set(NEG_INF)   # padded actions vanish in softmax

    grid = (B_pad // BATCH_TILE,)

    cost = pl.CostEstimate(
        flops=2 * B_pad * (F_ * H + H * A_pad),
        transcendentals=B_pad * A_pad,                        # exp in softmax
        bytes_accessed=4 * (x.size + w1p.size + w2p.size + B_pad * A_pad),
    )

    out = pl.pallas_call(
        policy_kernel,
        out_shape=jax.ShapeDtypeStruct((B_pad, A_pad), jnp.float32),
        grid=grid,
        in_specs=[
            pl.BlockSpec((BATCH_TILE, F_), lambda i: (i, 0)),   # batch-tiled
            pl.BlockSpec((F_ + 1, H), lambda i: (0, 0)),        # resident weights
            pl.BlockSpec((H + 1, A_pad), lambda i: (0, 0)),     # resident weights
        ],
        out_specs=pl.BlockSpec((BATCH_TILE, A_pad), lambda i: (i, 0)),
        compiler_params=pltpu.CompilerParams(
            dimension_semantics=("parallel",)),                 # v7x: 2 TCs split batch
        cost_estimate=cost,
    )(x, w1p, w2p)

    return out[:B, :A]                                          # (B, num_actions)


def policy_forward(state, w1, b1, w2, b2):
    """Single-state path matching the torch module exactly: returns (num_actions,)."""
    return policy_forward_batched(state.reshape(1, -1), w1, b1, w2, b2)[0]


if __name__ == "__main__":
    # Small shapes consistent with the module: a (4, 16) state grid flattened
    # to in_features=64, hidden_size=32, num_actions=8, batch of 16 states.
    in_shape = (4, 16)
    in_features = in_shape[0] * in_shape[1]
    hidden_size = 32
    num_actions = 8
    batch = 16

    key = jax.random.PRNGKey(0)
    k_states, k_w1, k_b1, k_w2, k_b2 = jax.random.split(key, 5)

    states = jax.random.normal(k_states, (batch,) + in_shape, dtype=jnp.float32)

    # Deterministic init mimicking nn.Linear's uniform(-1/sqrt(fan_in), 1/sqrt(fan_in))
    bound1 = 1.0 / jnp.sqrt(in_features)
    w1 = jax.random.uniform(k_w1, (in_features, hidden_size), jnp.float32, -bound1, bound1)
    b1 = jax.random.uniform(k_b1, (hidden_size,), jnp.float32, -bound1, bound1)
    bound2 = 1.0 / jnp.sqrt(hidden_size)
    w2 = jax.random.uniform(k_w2, (hidden_size, num_actions), jnp.float32, -bound2, bound2)
    b2 = jax.random.uniform(k_b2, (num_actions,), jnp.float32, -bound2, bound2)

    # Batched forward (main, MXU-friendly path).
    log_probs = jax.block_until_ready(policy_forward_batched(states, w1, b1, w2, b2))
    assert log_probs.shape == (batch, num_actions)

    # Pure-JAX reference (identical math to the torch module per state).
    x = states.reshape(batch, -1)
    h = jnp.maximum(x @ w1 + b1, 0.0)
    ref = jax.nn.log_softmax(h @ w2 + b2, axis=-1)
    assert jnp.allclose(log_probs, ref, atol=1e-5), (log_probs, ref)

    # Single-state path matches LogSoftmax(dim=0) on the 1-D logits vector.
    lp0 = jax.block_until_ready(policy_forward(states[0], w1, b1, w2, b2))
    x0 = states[0].reshape(-1)
    ref0 = jax.nn.log_softmax(jnp.maximum(x0 @ w1 + b1, 0.0) @ w2 + b2, axis=0)
    assert lp0.shape == (num_actions,)
    assert jnp.allclose(lp0, ref0, atol=1e-5), (lp0, ref0)

    print("KERNEL_OK")
</pallas_src>

<mosaic_0001>
module attributes {stable_mosaic.version = 11 : i64} {
  func.func @policy_kernel(%arg0: i32, %arg1: memref<8x64xf32, #tpu.memory_space<vmem>>, %arg2: memref<65x32xf32, #tpu.memory_space<vmem>>, %arg3: memref<33x128xf32, #tpu.memory_space<vmem>>, %arg4: memref<8x128xf32, #tpu.memory_space<vmem>>) attributes {dimension_semantics = [#tpu.dimension_semantics<parallel>], iteration_bounds = array<i64: 2>, scalar_prefetch = 0 : i64, scratch_operands = 0 : i64, tpu.core_type = #tpu.core_type<tc>, window_params = [{transform_indices = @transform_0, window_bounds = array<i64: 8, 64>}, {pipeline_mode = #tpu.pipeline_mode<synchronous>, transform_indices = @transform_1, window_bounds = array<i64: 65, 32>}, {pipeline_mode = #tpu.pipeline_mode<synchronous>, transform_indices = @transform_2, window_bounds = array<i64: 33, 128>}, {transform_indices = @transform_3, window_bounds = array<i64: 8, 128>}]} {
    %c0 = arith.constant 0 : index
    %c0_0 = arith.constant 0 : index
    %0 = vector.load %arg1[%c0, %c0_0] : memref<8x64xf32, #tpu.memory_space<vmem>>, vector<8x64xf32>
    %c0_1 = arith.constant 0 : index
    %c0_2 = arith.constant 0 : index
    %1 = vector.load %arg2[%c0_1, %c0_2] : memref<65x32xf32, #tpu.memory_space<vmem>>, vector<64x32xf32>
    %c64 = arith.constant 64 : index
    %c0_3 = arith.constant 0 : index
    %2 = vector.load %arg2[%c64, %c0_3] : memref<65x32xf32, #tpu.memory_space<vmem>>, vector<1x32xf32>
    %cst = arith.constant dense<0.000000e+00> : vector<8x32xf32>
    %3 = tpu.matmul %0, %1, %cst {dimension_numbers = #tpu.dot_dimension_numbers<[1], [0], [0], [1], [0, 0, 1, 1], [], []>} : vector<8x64xf32>, vector<64x32xf32>, vector<8x32xf32> -> vector<8x32xf32>
    %4 = vector.broadcast %2 : vector<1x32xf32> to vector<8x32xf32>
    %5 = arith.addf %3, %4 : vector<8x32xf32>
    %cst_4 = arith.constant 0.000000e+00 : f32
    %6 = vector.broadcast %cst_4 : f32 to vector<8x32xf32>
    %7 = arith.maximumf %5, %6 : vector<8x32xf32>
    %c0_5 = arith.constant 0 : index
    %c0_6 = arith.constant 0 : index
    %8 = vector.load %arg3[%c0_5, %c0_6] : memref<33x128xf32, #tpu.memory_space<vmem>>, vector<32x128xf32>
    %c32 = arith.constant 32 : index
    %c0_7 = arith.constant 0 : index
    %9 = vector.load %arg3[%c32, %c0_7] : memref<33x128xf32, #tpu.memory_space<vmem>>, vector<1x128xf32>
    %cst_8 = arith.constant dense<0.000000e+00> : vector<8x128xf32>
    %10 = tpu.matmul %7, %8, %cst_8 {dimension_numbers = #tpu.dot_dimension_numbers<[1], [0], [0], [1], [0, 0, 1, 1], [], []>} : vector<8x32xf32>, vector<32x128xf32>, vector<8x128xf32> -> vector<8x128xf32>
    %11 = vector.broadcast %9 : vector<1x128xf32> to vector<8x128xf32>
    %12 = arith.addf %10, %11 : vector<8x128xf32>
    %cst_9 = arith.constant dense<0xFF800000> : vector<8xf32>
    %13 = vector.multi_reduction <maximumf>, %12, %cst_9 [1] : vector<8x128xf32> to vector<8xf32>
    %14 = vector.shape_cast %13 : vector<8xf32> to vector<8x1xf32>
    %15 = vector.broadcast %14 : vector<8x1xf32> to vector<8x128xf32>
    %16 = arith.subf %12, %15 : vector<8x128xf32>
    %17 = math.exp %16 : vector<8x128xf32>
    %cst_10 = arith.constant dense<0.000000e+00> : vector<8xf32>
    %18 = vector.multi_reduction <add>, %17, %cst_10 [1] : vector<8x128xf32> to vector<8xf32>
    %19 = vector.shape_cast %18 : vector<8xf32> to vector<8x1xf32>
    %20 = math.log %19 : vector<8x1xf32>
    %21 = arith.addf %14, %20 : vector<8x1xf32>
    %22 = vector.broadcast %21 : vector<8x1xf32> to vector<8x128xf32>
    %23 = arith.subf %12, %22 : vector<8x128xf32>
    %c0_11 = arith.constant 0 : index
    %c0_12 = arith.constant 0 : index
    %24 = vector.load %arg4[%c0_11, %c0_12] : memref<8x128xf32, #tpu.memory_space<vmem>>, vector<8x128xf32>
    tpu.vector_store %arg4[%c0_11, %c0_12], %23 {strides = array<i32>} : memref<8x128xf32, #tpu.memory_space<vmem>>, vector<8x128xf32>,
    return
  }
  func.func @transform_0(%arg0: i32) -> (i32, i32) {
    %c0_i32 = arith.constant 0 : i32
    %c0_i32_0 = arith.constant 0 : i32
    return %arg0, %c0_i32 : i32, i32
  }
  func.func @transform_1(%arg0: i32) -> (i32, i32) {
    %c0_i32 = arith.constant 0 : i32
    %c0_i32_0 = arith.constant 0 : i32
    %c0_i32_1 = arith.constant 0 : i32
    return %c0_i32, %c0_i32_0 : i32, i32
  }
  func.func @transform_2(%arg0: i32) -> (i32, i32) {
    %c0_i32 = arith.constant 0 : i32
    %c0_i32_0 = arith.constant 0 : i32
    %c0_i32_1 = arith.constant 0 : i32
    return %c0_i32, %c0_i32_0 : i32, i32
  }
  func.func @transform_3(%arg0: i32) -> (i32, i32) {
    %c0_i32 = arith.constant 0 : i32
    %c0_i32_0 = arith.constant 0 : i32
    return %arg0, %c0_i32 : i32, i32
  }
}

</mosaic_0001>

<llo_original>
// kernel: tpu_custom_call.1
$region0: #{tpu_custom_call.1}
  #allocation0 [shape = 'u32[]', space=smem, size = 0x4, offset = 0x4, fixed_abs, tag = 'smem constant byte address 0x4 - core index']
  #allocation1 [shape = 'u32[144,128]{1,0:T(1,128)}', space=vmem, size = 0x12000, scoped, tag = 'internal scratch']
  %s0 = inlined_call_operand.vmem [shape: f32[16,64], index: 0, kind: input, shape index: {}]
  %s1 = inlined_call_operand.vmem [shape: f32[65,32], index: 1, kind: input, shape index: {}]
  %s2 = inlined_call_operand.vmem [shape: f32[33,128], index: 2, kind: input, shape index: {}]
  %s3 = inlined_call_operand.hbm [shape: f32[16,128], index: 3, kind: output, shape index: {}]
  %s4 = sld [smem:[#allocation0]]
  $region45: #{tpu_custom_call.1} parent=0
    _
  %s6 = ssub.s32 1, %s4
  %s7 = scalar_select 0, %s6, %s4
  $region1: #{tpu_custom_call.1} parent=0
    #allocation2 [shape = 'u8[8192]{0}', space=vmem, size = 0x2000, scoped, tag = 'output window, operand 0']
    #allocation3 [shape = 's32[2]{0}', space=sflag, size = 0x8, scoped, tag = 'scoped memory for tpu_custom_call.1']
    %8 = vsyncpa [#allocation3], 0
    %s9 = scalar_lea.sflag [#allocation3], 1
    %10 = vsyncpa %s9, 0
    loop: start=0, step=1, limit=4
    $region2: #{tpu_custom_call.1} parent=1 // loop_pre_header
      _
    $region3: #{tpu_custom_call.1} parent=1 // loop_header
      %s12 = sphi 0, %s16
      %p13 = scmp.ge.s32.totalorder %s12, 4
      %s22 = sphi 0, %s24
      %s25 = sphi 0, %s22
      %s26 = sphi 0, %s25
      %s42 = sphi 0, %s26
      %s46 = sphi 0, %s46
      %s48 = sphi 0, %s46
      %s49 = sphi 0, %s48
      %s63 = sphi 0, %s49
      %s67 = sphi 0, %s67
      %s69 = sphi 0, %s67
      %s70 = sphi 0, %s69
      %s84 = sphi 0, %s70
      %s90 = sphi 0, %s92
      %s93 = sphi 0, %s90
      %s94 = sphi 0, %s93
      %s110 = sphi 0, %s94
    $region4: #{tpu_custom_call.1} parent=1 // loop_header_branch
      %15 = sbr.rel (%p13) target = $region8
    $region5: #{tpu_custom_call.1} parent=1 // loop_body
      %s17 = ssub.s32 %s12, 1
      %s18 = ssub.s32 %s12, 2
      %s19 = sadd.s32 %s12, 1
      %s20 = ssub.s32 %s12, %s19
      %p21 = scmp.eq.s32.totalorder %s20, 0
      %s23 = sadd.s32 %s22, 1
      %s24 = scalar_select %p21, %s22, %s23
      %p27 = pneg %p21
      %p28 = scmp.eq.s32.totalorder %s12, 1
      %p29 = por %p27, %p28
      %p30 = scmp.ne.s32.totalorder %s22, %s25
      %p31 = scmp.eq.s32.totalorder %s12, 0
      %p32 = por %p30, %p31
      %p33 = scmp.ne.s32.totalorder %s22, %s25
      %p34 = scmp.eq.s32.totalorder %s17, 1
      %p35 = por %p33, %p34
      %p36 = scmp.ne.s32.totalorder %s25, %s26
      %p37 = scmp.eq.s32.totalorder %s17, 0
      %p38 = por %p36, %p37
      %p39 = scmp.ne.s32.totalorder %s25, %s26
      %p40 = scmp.eq.s32.totalorder %s18, 1
      %p41 = por %p39, %p40
      %p43 = scmp.ne.s32.totalorder %s26, %s42
      %p44 = scmp.eq.s32.totalorder %s18, 0
      %p45 = por %p43, %p44
      %s47 = sadd.s32 %s46, 1
      %p50 = scmp.eq.s32.totalorder %s12, 1
      %p51 = scmp.ne.s32.totalorder %s46, %s48
      %p52 = scmp.eq.s32.totalorder %s12, 0
      %p53 = por %p51, %p52
      %p54 = scmp.ne.s32.totalorder %s46, %s48
      %p55 = scmp.eq.s32.totalorder %s17, 1
      %p56 = por %p54, %p55
      %p57 = scmp.ne.s32.totalorder %s48, %s49
      %p58 = scmp.eq.s32.totalorder %s17, 0
      %p59 = por %p57, %p58
      %p60 = scmp.ne.s32.totalorder %s48, %s49
      %p61 = scmp.eq.s32.totalorder %s18, 1
      %p62 = por %p60, %p61
      %p64 = scmp.ne.s32.totalorder %s49, %s63
      %p65 = scmp.eq.s32.totalorder %s18, 0
      %p66 = por %p64, %p65
      %s68 = sadd.s32 %s67, 1
      %p71 = scmp.eq.s32.totalorder %s12, 1
      %p72 = scmp.ne.s32.totalorder %s67, %s69
      %p73 = scmp.eq.s32.totalorder %s12, 0
      %p74 = por %p72, %p73
      %p75 = scmp.ne.s32.totalorder %s67, %s69
      %p76 = scmp.eq.s32.totalorder %s17, 1
      %p77 = por %p75, %p76
      %p78 = scmp.ne.s32.totalorder %s69, %s70
      %p79 = scmp.eq.s32.totalorder %s17, 0
      %p80 = por %p78, %p79
      %p81 = scmp.ne.s32.totalorder %s69, %s70
      %p82 = scmp.eq.s32.totalorder %s18, 1
      %p83 = por %p81, %p82
      %p85 = scmp.ne.s32.totalorder %s70, %s84
      %p86 = scmp.eq.s32.totalorder %s18, 0
      %p87 = por %p85, %p86
      %s88 = ssub.s32 %s12, %s19
      %p89 = scmp.eq.s32.totalorder %s88, 0
      %s91 = sadd.s32 %s90, 1
      %s92 = scalar_select %p89, %s90, %s91
      %p95 = pneg %p89
      %p96 = scmp.eq.s32.totalorder %s12, 1
      %p97 = por %p95, %p96
      %p98 = scmp.ne.s32.totalorder %s90, %s93
      %p99 = scmp.eq.s32.totalorder %s12, 0
      %p100 = por %p98, %p99
      %p101 = scmp.ne.s32.totalorder %s90, %s93
      %p102 = scmp.eq.s32.totalorder %s17, 1
      %p103 = por %p101, %p102
      %p104 = scmp.ne.s32.totalorder %s93, %s94
      %p105 = scmp.eq.s32.totalorder %s17, 0
      %p106 = por %p104, %p105
      %p107 = scmp.ne.s32.totalorder %s93, %s94
      %p108 = scmp.eq.s32.totalorder %s18, 1
      %p109 = por %p107, %p108
      %p111 = scmp.ne.s32.totalorder %s94, %s110
      %p112 = scmp.eq.s32.totalorder %s18, 0
      %p113 = por %p111, %p112
      %p114 = scmp.le.s32.totalorder 1, %s12
      %p115 = scmp.lt.s32.totalorder %s12, 3
      %p116 = pnand %p114, %p115
      %p117 = pneg %p116
      // Predicated region
      $region9: #{tpu_custom_call.1} parent=5 // pred_check
        _
      $region10: #{tpu_custom_call.1} parent=5 // pred_check_branch
        %119 = sbr.rel (%p116) target = $region12
      $region11: #{tpu_custom_call.1} parent=5 // pred_region
        %s120 = ssub.s32 %s12, 1
        // Predicated region
        $region13: #{tpu_custom_call.1} parent=11 // pred_check
          %p121 = pneg %p59
        $region14: #{tpu_custom_call.1} parent=11 // pred_check_branch
          %123 = sbr.rel (%p121) target = $region16
        $region15: #{tpu_custom_call.1} parent=11 // pred_region
          _
        $region16: #{tpu_custom_call.1} parent=11 // pred_fallthru
          _
        // Predicated region
        $region17: #{tpu_custom_call.1} parent=11 // pred_check
          %p124 = pneg %p80
        $region18: #{tpu_custom_call.1} parent=11 // pred_check_branch
          %126 = sbr.rel (%p124) target = $region20
        $region19: #{tpu_custom_call.1} parent=11 // pred_region
          _
        $region20: #{tpu_custom_call.1} parent=11 // pred_fallthru
          _
      $region12: #{tpu_custom_call.1} parent=5 // pred_fallthru
        _
      %p127 = scmp.lt.s32.totalorder %s12, 2
      // Predicated region
      $region21: #{tpu_custom_call.1} parent=5 // pred_check
        %p128 = pneg %p127
      $region22: #{tpu_custom_call.1} parent=5 // pred_check_branch
        %130 = sbr.rel (%p128) target = $region24
      $region23: #{tpu_custom_call.1} parent=5 // pred_region
        // Predicated region
        $region25: #{tpu_custom_call.1} parent=23 // pred_check
          %p131 = pneg %p32
        $region26: #{tpu_custom_call.1} parent=23 // pred_check_branch
          %133 = sbr.rel (%p131) target = $region28
        $region27: #{tpu_custom_call.1} parent=23 // pred_region
          %p134 = scmp.lt.s32.totalorder %s12, 1
          %s135 = scalar_select %p134, %s12, 1
          %s136 = smul.addr %s135, 8
          %s137 = scalar_lea.vmem %s0, %s136
        $region28: #{tpu_custom_call.1} parent=23 // pred_fallthru
          _
      $region24: #{tpu_custom_call.1} parent=5 // pred_fallthru
        _
      %p138 = scmp.le.s32.totalorder 1, %s12
      %p139 = scmp.lt.s32.totalorder %s12, 3
      %p140 = pnand %p138, %p139
      %p141 = pneg %p140
      // Predicated region
      $region29: #{tpu_custom_call.1} parent=5 // pred_check
        _
      $region30: #{tpu_custom_call.1} parent=5 // pred_check_branch
        %143 = sbr.rel (%p140) target = $region32
      $region31: #{tpu_custom_call.1} parent=5 // pred_region
        %s144 = ssub.s32 %s12, 1
        %p145 = scmp.lt.s32.totalorder %s17, 1
        %s146 = scalar_select %p145, %s17, 1
        %s147 = smul.addr %s146, 8
        %s148 = scalar_lea.vmem %s0, %s147
        %p149 = pneg %p38
        %p150 = pneg %p35
        %p151 = pneg %p59
        %p152 = pneg %p56
        %p153 = pneg %p80
        %p154 = pneg %p77
        %p155 = pneg %p106
        %p156 = pneg %p103
        %s157 = sand.u32 %s93, 1
        %s158 = scalar_lea.sflag [#allocation3], %s157
        %s159 = sand.u32 %s93, 1
        %s160 = smul.addr %s159, 8
        %s161 = scalar_lea.vmem [#allocation2], %s160
        %p162 = scmp.lt.s32.totalorder %s17, 1
        %s163 = scalar_select %p162, %s17, 1
        %s164 = smul.addr %s163, 8
        %s165 = scalar_lea.vmem %s0, %s164
        %v166 = vld [vmem:[%s165] sm:$0xff]
        %v167 = vld [vmem:[%s1] sm:$0xff]
        %v168 = vld [vmem:[%s1 + $0x8] sm:$0xff]
        %v169 = vld [vmem:[%s1 + $0x10] sm:$0xff]
        %v170 = vld [vmem:[%s1 + $0x18] sm:$0xff]
        %v171 = vld [vmem:[%s1 + $0x20] sm:$0xff]
        %v172 = vld [vmem:[%s1 + $0x28] sm:$0xff]
        %v173 = vld [vmem:[%s1 + $0x30] sm:$0xff]
        %v174 = vld [vmem:[%s1 + $0x38] sm:$0xff]
        %v175 = vld [vmem:[%s1 + $0x40] sm:$0x1]
        %v176 = vlaneseq
        %v177 = vshrl.u32 %v176, 7
        %v178 = vsub.s32 0, %v177
        %v179 = vrot.slane %v175, %v178
        %vm180 = vcmask 523264
        %v182 = vsel %vm180, %v166, 0
        %184 = vmatprep.subr.mxu0 0.0
        %185 = vmatpush1.msra.mxu0 %v167
        %186 = vmatprep.subr.mxu0 0.0
        %187 = vmatpush1.msra.mxu0 %v168
        %188 = vmatprep.subr.mxu0 0.0
        %189 = vmatpush1.msra.mxu0 %v169
        %190 = vmatprep.subr.mxu0 0.0
        %191 = vmatpush1.msra.mxu0 %v170
        %192 = vmatprep.subr.mxu0 0.0
        %193 = vmatpush1.msra.mxu0 %v171
        %194 = vmatprep.subr.mxu0 0.0
        %195 = vmatpush1.msra.mxu0 %v172
        %196 = vmatprep.subr.mxu0 0.0
        %197 = vmatpush1.msra.mxu0 %v173
        %198 = vmatprep.subr.mxu0 0.0
        %199 = vmatpush1.msra.mxu0 %v174
        %200 = vmatprep.subr.mxu0 0.0
        %201 = vmatpush1.msra.mxu0 0.0
        %202 = vmatprep.subr.mxu0 0.0
        %203 = vmatpush1.msra.mxu0 0.0
        %204 = vmatprep.subr.mxu0 0.0
        %205 = vmatpush1.msra.mxu0 0.0
        %206 = vmatprep.subr.mxu0 0.0
        %207 = vmatpush1.msra.mxu0 0.0
        %208 = vmatprep.subr.mxu0 0.0
        %209 = vmatpush1.msra.mxu0 0.0
        %210 = vmatprep.subr.mxu0 0.0
        %211 = vmatpush1.msra.mxu0 0.0
        %212 = vmatprep.subr.mxu0 0.0
        %213 = vmatpush1.msra.mxu0 0.0
        %214 = vmatprep.subr.mxu0 0.0
        %215 = vmatpush1.msra.mxu0 0.0
        %216 = vmatprep.subr.mxu0 0.0
        %217 = vmatpush1.msra.mxu0 0.0
        %218 = vmatprep.subr.mxu0 0.0
        %219 = vmatpush1.msra.mxu0 0.0
        %220 = vmatprep.subr.mxu0 0.0
        %221 = vmatpush1.msra.mxu0 0.0
        %222 = vmatprep.subr.mxu0 0.0
        %223 = vmatpush1.msra.mxu0 0.0
        %224 = vmatprep.subr.mxu0 0.0
        %225 = vmatpush1.msra.mxu0 0.0
        %226 = vmatprep.subr.mxu0 0.0
        %227 = vmatpush1.msra.mxu0 0.0
        %228 = vmatprep.subr.mxu0 0.0
        %229 = vmatpush1.msra.mxu0 0.0
        %230 = vmatprep.subr.mxu0 0.0
        %231 = vmatpush1.msra.mxu0 0.0
        %232 = vmatprep.subr.mxu0 0.0
        %233 = vmatpush1.msra.mxu0 0.0
        %234 = vmatprep.subr.mxu0 0.0
        %235 = vmatpush1.msra.mxu0 0.0
        %236 = vmatprep.subr.mxu0 0.0
        %237 = vmatpush1.msra.mxu0 0.0
        %238 = vmatprep.subr.mxu0 0.0
        %239 = vmatpush1.msra.mxu0 0.0
        %240 = vmatprep.subr.mxu0 0.0
        %241 = vmatpush1.msra.mxu0 0.0
        %242 = vmatprep.subr.mxu0 0.0
        %243 = vmatpush1.msra.mxu0 0.0
        %244 = vmatprep.subr.mxu0 0.0
        %245 = vmatpush1.msra.mxu0 0.0
        %246 = vmatprep.subr.mxu0 0.0
        %247 = vmatpush1.msra.mxu0 0.0
        %248 = vmatprep.mubr.f32.mxu0 0.0
        %249 = vmatmul.mubr.f32.gmra.mrb[0].mxu0 %v182
        %v250 = vpop.f32.mrb[0].mxu0
        %v251 = vadd.f32 %v179, %v250
        %v252 = vpop.f32.mrb[0].mxu0
        %253 = vdwg.mxu0
        %v254 = vmax.f32 %v251, 0.0
        %v255 = vld [vmem:[%s2] sm:$0xff]
        %v256 = vld [vmem:[%s2 + $0x8] sm:$0xff]
        %v257 = vld [vmem:[%s2 + $0x10] sm:$0xff]
        %v258 = vld [vmem:[%s2 + $0x18] sm:$0xff]
        %v259 = vld [vmem:[%s2 + $0x20] sm:$0x1]
        %v260 = vlaneseq
        %v261 = vshrl.u32 %v260, 7
        %v262 = vsub.s32 0, %v261
        %v263 = vrot.slane %v259, %v262
        %vm264 = vcmask 261120
        %v266 = vsel %vm264, %v254, 0
        %268 = vmatprep.subr.mxu0 0.0
        %269 = vmatpush1.msra.mxu0 %v255
        %270 = vmatprep.subr.mxu0 0.0
        %271 = vmatpush1.msra.mxu0 %v256
        %272 = vmatprep.subr.mxu0 0.0
        %273 = vmatpush1.msra.mxu0 %v257
        %274 = vmatprep.subr.mxu0 0.0
        %275 = vmatpush1.msra.mxu0 %v258
        %276 = vmatprep.subr.mxu0 0.0
        %277 = vmatpush1.msra.mxu0 0.0
        %278 = vmatprep.subr.mxu0 0.0
        %279 = vmatpush1.msra.mxu0 0.0
        %280 = vmatprep.subr.mxu0 0.0
        %281 = vmatpush1.msra.mxu0 0.0
        %282 = vmatprep.subr.mxu0 0.0
        %283 = vmatpush1.msra.mxu0 0.0
        %284 = vmatprep.subr.mxu0 0.0
        %285 = vmatpush1.msra.mxu0 0.0
        %286 = vmatprep.subr.mxu0 0.0
        %287 = vmatpush1.msra.mxu0 0.0
        %288 = vmatprep.subr.mxu0 0.0
        %289 = vmatpush1.msra.mxu0 0.0
        %290 = vmatprep.subr.mxu0 0.0
        %291 = vmatpush1.msra.mxu0 0.0
        %292 = vmatprep.subr.mxu0 0.0
        %293 = vmatpush1.msra.mxu0 0.0
        %294 = vmatprep.subr.mxu0 0.0
        %295 = vmatpush1.msra.mxu0 0.0
        %296 = vmatprep.subr.mxu0 0.0
        %297 = vmatpush1.msra.mxu0 0.0
        %298 = vmatprep.subr.mxu0 0.0
        %299 = vmatpush1.msra.mxu0 0.0
        %300 = vmatprep.subr.mxu0 0.0
        %301 = vmatpush1.msra.mxu0 0.0
        %302 = vmatprep.subr.mxu0 0.0
        %303 = vmatpush1.msra.mxu0 0.0
        %304 = vmatprep.subr.mxu0 0.0
        %305 = vmatpush1.msra.mxu0 0.0
        %306 = vmatprep.subr.mxu0 0.0
        %307 = vmatpush1.msra.mxu0 0.0
        %308 = vmatprep.subr.mxu0 0.0
        %309 = vmatpush1.msra.mxu0 0.0
        %310 = vmatprep.subr.mxu0 0.0
        %311 = vmatpush1.msra.mxu0 0.0
        %312 = vmatprep.subr.mxu0 0.0
        %313 = vmatpush1.msra.mxu0 0.0
        %314 = vmatprep.subr.mxu0 0.0
        %315 = vmatpush1.msra.mxu0 0.0
        %316 = vmatprep.subr.mxu0 0.0
        %317 = vmatpush1.msra.mxu0 0.0
        %318 = vmatprep.subr.mxu0 0.0
        %319 = vmatpush1.msra.mxu0 0.0
        %320 = vmatprep.subr.mxu0 0.0
        %321 = vmatpush1.msra.mxu0 0.0
        %322 = vmatprep.subr.mxu0 0.0
        %323 = vmatpush1.msra.mxu0 0.0
        %324 = vmatprep.subr.mxu0 0.0
        %325 = vmatpush1.msra.mxu0 0.0
        %326 = vmatprep.subr.mxu0 0.0
        %327 = vmatpush1.msra.mxu0 0.0
        %328 = vmatprep.subr.mxu0 0.0
        %329 = vmatpush1.msra.mxu0 0.0
        %330 = vmatprep.subr.mxu0 0.0
        %331 = vmatpush1.msra.mxu0 0.0
        %332 = vmatprep.mubr.f32.mxu0 0.0
        %333 = vmatmul.mubr.f32.gmra.mrb[0].mxu0 %v266
        %v334 = vpop.f32.mrb[0].mxu0
        %v335 = vadd.f32 %v263, %v334
        %v336 = vpop.f32.mrb[0].mxu0
        %337 = vdwg.mxu0
        %338 = vmax.xlane.f32.xlu0 %v335
        %v339 = vpop.xlane.xlu0 %338
        %v340 = vsub.f32 %v335, %v339
        %v341 = vmul.f32 %v340, 1.442695
        %v342 = vpow.pop %v341
        %343 = vadd.xlane.f32.xlu0 %v342
        %v344 = vpop.xlane.xlu0 %343
        %v345 = vlog2.pop %v344
        %v346 = vmul.f32 %v345, 0.6931472
        %v347 = vadd.f32 %v339, %v346
        %v348 = vsub.f32 %v335, %v347
        %349 = vst [vmem:[%s161] sm:$0xff] %v348
        %s350 = sand.u32 %s93, 1
        %s351 = scalar_lea.sflag [#allocation3], %s350
        %s352 = sand.u32 %s93, 1
        %s353 = smul.addr %s352, 8
        %s354 = scalar_lea.vmem [#allocation2], %s353
        // Predicated region
        $region33: #{tpu_custom_call.1} parent=31 // pred_check
          %p355 = pneg %p103
        $region34: #{tpu_custom_call.1} parent=31 // pred_check_branch
          %357 = sbr.rel (%p355) target = $region36
        $region35: #{tpu_custom_call.1} parent=31 // pred_region
          %s359 = ssub.s32 128, 128
          %360 = vsyncadd %s351, %s359
          %s361 = smul.addr %s17, 128
          %s362 = scalar_lea.hbm %s3, %s361
          %s364 = sshll.u32 %s354, 4
          %s365 = int_to_ptr.vmem [resolvable:$true] %s364
          %367 = dma.vmem_to_hbm [thread:$0]  %s365, 128, %s362, %s351
        $region36: #{tpu_custom_call.1} parent=31 // pred_fallthru
          _
      $region32: #{tpu_custom_call.1} parent=5 // pred_fallthru
        _
      %p368 = scmp.le.s32.totalorder 2, %s12
      // Predicated region
      $region37: #{tpu_custom_call.1} parent=5 // pred_check
        %p369 = pneg %p368
      $region38: #{tpu_custom_call.1} parent=5 // pred_check_branch
        %371 = sbr.rel (%p369) target = $region40
      $region39: #{tpu_custom_call.1} parent=5 // pred_region
        %s372 = ssub.s32 %s12, 2
        // Predicated region
        $region41: #{tpu_custom_call.1} parent=39 // pred_check
          %p373 = pneg %p109
        $region42: #{tpu_custom_call.1} parent=39 // pred_check_branch
          %375 = sbr.rel (%p373) target = $region44
        $region43: #{tpu_custom_call.1} parent=39 // pred_region
          %s376 = sand.u32 %s94, 1
          %s377 = scalar_lea.sflag [#allocation3], %s376
          %s378 = sand.u32 %s94, 1
          %s379 = smul.addr %s378, 8
          %s380 = scalar_lea.vmem [#allocation2], %s379
          %381 = dma.done %s377, 128
        $region44: #{tpu_custom_call.1} parent=39 // pred_fallthru
          _
      $region40: #{tpu_custom_call.1} parent=5 // pred_fallthru
        _
    $region6: #{tpu_custom_call.1} parent=1 // loop_footer
      %s16 = sadd.s32 1, %s12
    $region7: #{tpu_custom_call.1} parent=1 // loop_footer_branch
      %11 = sbr.rel target = $region3
    $region8: #{tpu_custom_call.1} parent=1 // loop_exit
      _
    %382 = vsyncpa [#allocation3], 1
    %s383 = scalar_lea.sflag [#allocation3], 1
    %384 = vsyncpa %s383, 1

</llo_original>
